<compile_context>
chip_gen: v7x
topology: tpu7x:2x2x1
jax: 0.10.0
libtpu: 0.0.40
codegen_flags: <defaults>
</compile_context>

<pallas_src>
import numpy as np
import jax
import jax.numpy as jnp
from jax.experimental import pallas as pl
from jax.experimental.pallas import tpu as pltpu

C_PAD = 128  # lane-dense padded class width for the output block


def gclassifier_kernel(a_ref, x_ref, pool_ref, w1_ref, b1_ref, w2_ref, b2_ref,
                       wm_ref, bm_ref, o_ref):
    """One grid step = one tile of B_TILE graphs stacked along the node axis.

    a_ref    [T*N, T*N] bf16  block-diagonal normalized adjacency (T = B_TILE)
    x_ref    [T*N, F]   bf16  stacked node features
    pool_ref [T, T*N]   bf16  segment-mean matrix (1/N over each graph's nodes)
    w*/b*               bf16/f32 shared parameters (constant index_map)
    o_ref    [T, C_PAD] f32   padded logits (lane-dense)
    """
    a = a_ref[...]

    # GCNConv 1 + ReLU:  relu(A_hat @ (X @ W1) + b1)
    t = jnp.dot(x_ref[...], w1_ref[...], preferred_element_type=jnp.float32)
    h = jnp.dot(a, t.astype(jnp.bfloat16),
                preferred_element_type=jnp.float32) + b1_ref[...]
    h = jnp.maximum(h, 0.0)

    # GCNConv 2 + ReLU
    t = jnp.dot(h.astype(jnp.bfloat16), w2_ref[...],
                preferred_element_type=jnp.float32)
    h = jnp.dot(a, t.astype(jnp.bfloat16),
                preferred_element_type=jnp.float32) + b2_ref[...]
    h = jnp.maximum(h, 0.0)

    # F.dropout(x, training=False) -> identity (eval mode).

    # Per-graph mean over nodes as a matmul (MXU, not XLU), then Linear head.
    pooled = jnp.dot(pool_ref[...], h.astype(jnp.bfloat16),
                     preferred_element_type=jnp.float32)            # [T, hidden]
    o_ref[...] = (jnp.dot(pooled.astype(jnp.bfloat16), wm_ref[...],
                          preferred_element_type=jnp.float32)
                  + bm_ref[...])                                    # [T, C_PAD]


def gclassifier_forward(a_hat, x, w1, b1, w2, b2, wm, bm, *, b_tile=16):
    """Batched forward. a_hat: [B,N,N], x: [B,N,F]; returns logits [B, C] f32."""
    B, N, F = x.shape
    hidden = w1.shape[1]
    num_classes = wm.shape[1]

    # Pad batch to a multiple of b_tile with empty graphs (rows discarded later).
    B_pad = ((B + b_tile - 1) // b_tile) * b_tile
    if B_pad != B:
        a_hat = jnp.concatenate(
            [a_hat, jnp.zeros((B_pad - B, N, N), a_hat.dtype)], axis=0)
        x = jnp.concatenate(
            [x, jnp.zeros((B_pad - B, N, F), x.dtype)], axis=0)
    nt = B_pad // b_tile
    tn = b_tile * N

    # Block-diagonal adjacency per tile: [nt, T*N, T*N].
    eye = jnp.eye(b_tile, dtype=a_hat.dtype)
    a_blk = jnp.einsum('tirc,ij->tirjc', a_hat.reshape(nt, b_tile, N, N), eye)
    a_blk = a_blk.reshape(nt, tn, tn).astype(jnp.bfloat16)

    # Stacked node features: [B_pad*N, F].
    x_stk = x.reshape(B_pad * N, F).astype(jnp.bfloat16)

    # Segment-mean matrix: pool[i, i*N + r] = 1/N.
    pool = jnp.kron(jnp.eye(b_tile, dtype=jnp.float32),
                    jnp.full((1, N), 1.0 / N, jnp.float32)).astype(jnp.bfloat16)

    # Lane-dense head: pad classes to C_PAD columns (zeros, sliced off after).
    wm_p = jnp.zeros((hidden, C_PAD), jnp.float32).at[:, :num_classes].set(wm)
    bm_p = jnp.zeros((1, C_PAD), jnp.float32).at[:, :num_classes].set(bm)

    out = pl.pallas_call(
        gclassifier_kernel,
        out_shape=jax.ShapeDtypeStruct((B_pad, C_PAD), jnp.float32),
        grid=(nt,),
        in_specs=[
            pl.BlockSpec((None, tn, tn), lambda t: (t, 0, 0)),    # A (block-diag)
            pl.BlockSpec((tn, F), lambda t: (t, 0)),              # X stacked
            pl.BlockSpec((b_tile, tn), lambda t: (0, 0)),         # pooling matrix
            pl.BlockSpec((F, hidden), lambda t: (0, 0)),          # W1
            pl.BlockSpec((1, hidden), lambda t: (0, 0)),          # b1 (f32)
            pl.BlockSpec((hidden, hidden), lambda t: (0, 0)),     # W2
            pl.BlockSpec((1, hidden), lambda t: (0, 0)),          # b2 (f32)
            pl.BlockSpec((hidden, C_PAD), lambda t: (0, 0)),      # Wm (padded)
            pl.BlockSpec((1, C_PAD), lambda t: (0, 0)),           # bm (padded, f32)
        ],
        out_specs=pl.BlockSpec((b_tile, C_PAD), lambda t: (t, 0)),
        compiler_params=pltpu.CompilerParams(
            dimension_semantics=("parallel",)),
    )(a_blk, x_stk, pool,
      w1.astype(jnp.bfloat16), b1.astype(jnp.float32),
      w2.astype(jnp.bfloat16), b2.astype(jnp.float32),
      wm_p.astype(jnp.bfloat16), bm_p)

    return out[:B, :num_classes]


def build_norm_adj(edge_index, edge_attr, num_nodes):
    """Plain-JAX glue reproducing PyG gcn_norm (self-loops, symmetric D^-1/2 A D^-1/2)."""
    row = edge_index[0]                               # source
    col = edge_index[1]                               # target
    loop = jnp.arange(num_nodes, dtype=edge_index.dtype)
    row = jnp.concatenate([row, loop])
    col = jnp.concatenate([col, loop])
    w = jnp.concatenate([edge_attr.astype(jnp.float32),
                         jnp.ones((num_nodes,), dtype=jnp.float32)])
    # dense A[target, source] += weight  (propagate aggregates source -> target)
    adj = jnp.zeros((num_nodes, num_nodes), dtype=jnp.float32).at[col, row].add(w)
    deg = adj.sum(axis=1)                             # scatter_add(edge_weight, col)
    dinv = jnp.where(deg > 0, 1.0 / jnp.sqrt(deg), 0.0)
    return dinv[:, None] * adj * dinv[None, :]


if __name__ == "__main__":
    B = 32           # graphs per batch (2 grid tiles of 16)
    N = 8            # nodes per graph
    E = 16           # edges per graph
    INPUT_DIM = 32
    HIDDEN_DIM = 32
    NUM_CLASSES = 4

    key = jax.random.PRNGKey(0)
    k_x, k_ei, k_ea, k_w1, k_w2, k_wm, k_bm = jax.random.split(key, 7)

    # Batched graph inputs.
    x = jax.random.normal(k_x, (B, N, INPUT_DIM), dtype=jnp.float32)
    edge_index = jax.random.randint(k_ei, (B, 2, E), 0, N, dtype=jnp.int32)
    edge_attr = jax.random.uniform(k_ea, (B, E), dtype=jnp.float32,
                                   minval=0.1, maxval=1.0)

    # Shared parameters (synthetic init; shapes per GCNConv / nn.Linear).
    w1 = jax.random.normal(k_w1, (INPUT_DIM, HIDDEN_DIM), dtype=jnp.float32) * 0.1
    b1 = jnp.zeros((1, HIDDEN_DIM), dtype=jnp.float32)
    w2 = jax.random.normal(k_w2, (HIDDEN_DIM, HIDDEN_DIM), dtype=jnp.float32) * 0.1
    b2 = jnp.zeros((1, HIDDEN_DIM), dtype=jnp.float32)
    # nn.Linear(hidden, num_classes): stored pre-transposed so y = x @ W + b
    wm = jax.random.normal(k_wm, (HIDDEN_DIM, NUM_CLASSES), dtype=jnp.float32) * 0.1
    bm = jax.random.normal(k_bm, (1, NUM_CLASSES), dtype=jnp.float32) * 0.01

    # Per-graph normalized dense adjacency.
    a_hat = jax.vmap(build_norm_adj, in_axes=(0, 0, None))(edge_index, edge_attr, N)

    logits = jax.jit(gclassifier_forward)(a_hat, x, w1, b1, w2, b2, wm, bm)
    jax.block_until_ready(logits)
    assert logits.shape == (B, NUM_CLASSES)

    # Plain-JAX f32 reference (loose tolerance: kernel matmuls run in bf16).
    def ref_one(a, xg):
        h = jnp.maximum(a @ (xg @ w1) + b1, 0.0)
        h = jnp.maximum(a @ (h @ w2) + b2, 0.0)
        return jnp.mean(h, axis=0) @ wm + bm[0]

    ref = jax.vmap(ref_one)(a_hat, x)
    np.testing.assert_allclose(np.asarray(logits), np.asarray(ref),
                               atol=5e-2, rtol=5e-2)

    print("KERNEL_OK")
</pallas_src>

<mosaic_0001>
module attributes {stable_mosaic.version = 11 : i64} {
  func.func @gclassifier_kernel(%arg0: i32, %arg1: memref<1x128x128xbf16, #tpu.memory_space<vmem>>, %arg2: memref<128x32xbf16, #tpu.memory_space<vmem>>, %arg3: memref<16x128xbf16, #tpu.memory_space<vmem>>, %arg4: memref<32x32xbf16, #tpu.memory_space<vmem>>, %arg5: memref<1x32xf32, #tpu.memory_space<vmem>>, %arg6: memref<32x32xbf16, #tpu.memory_space<vmem>>, %arg7: memref<1x32xf32, #tpu.memory_space<vmem>>, %arg8: memref<32x128xbf16, #tpu.memory_space<vmem>>, %arg9: memref<1x128xf32, #tpu.memory_space<vmem>>, %arg10: memref<16x128xf32, #tpu.memory_space<vmem>>) attributes {dimension_semantics = [#tpu.dimension_semantics<parallel>], iteration_bounds = array<i64: 2>, scalar_prefetch = 0 : i64, scratch_operands = 0 : i64, tpu.core_type = #tpu.core_type<tc>, window_params = [{transform_indices = @transform_0, window_bounds = array<i64: 1, 128, 128>}, {transform_indices = @transform_1, window_bounds = array<i64: 128, 32>}, {pipeline_mode = #tpu.pipeline_mode<synchronous>, transform_indices = @transform_2, window_bounds = array<i64: 16, 128>}, {pipeline_mode = #tpu.pipeline_mode<synchronous>, transform_indices = @transform_3, window_bounds = array<i64: 32, 32>}, {pipeline_mode = #tpu.pipeline_mode<synchronous>, transform_indices = @transform_4, window_bounds = array<i64: 1, 32>}, {pipeline_mode = #tpu.pipeline_mode<synchronous>, transform_indices = @transform_5, window_bounds = array<i64: 32, 32>}, {pipeline_mode = #tpu.pipeline_mode<synchronous>, transform_indices = @transform_6, window_bounds = array<i64: 1, 32>}, {pipeline_mode = #tpu.pipeline_mode<synchronous>, transform_indices = @transform_7, window_bounds = array<i64: 32, 128>}, {pipeline_mode = #tpu.pipeline_mode<synchronous>, transform_indices = @transform_8, window_bounds = array<i64: 1, 128>}, {transform_indices = @transform_9, window_bounds = array<i64: 16, 128>}]} {
    %c0 = arith.constant 0 : index
    %c0_0 = arith.constant 0 : index
    %c0_1 = arith.constant 0 : index
    %0 = vector.load %arg1[%c0, %c0_0, %c0_1] : memref<1x128x128xbf16, #tpu.memory_space<vmem>>, vector<1x128x128xbf16>
    %1 = vector.shape_cast %0 : vector<1x128x128xbf16> to vector<128x128xbf16>
    %c0_2 = arith.constant 0 : index
    %c0_3 = arith.constant 0 : index
    %2 = vector.load %arg2[%c0_2, %c0_3] : memref<128x32xbf16, #tpu.memory_space<vmem>>, vector<128x32xbf16>
    %c0_4 = arith.constant 0 : index
    %c0_5 = arith.constant 0 : index
    %3 = vector.load %arg4[%c0_4, %c0_5] : memref<32x32xbf16, #tpu.memory_space<vmem>>, vector<32x32xbf16>
    %cst = arith.constant dense<0.000000e+00> : vector<128x32xf32>
    %4 = tpu.matmul %2, %3, %cst {dimension_numbers = #tpu.dot_dimension_numbers<[1], [0], [0], [1], [0, 0, 1, 1], [], []>} : vector<128x32xbf16>, vector<32x32xbf16>, vector<128x32xf32> -> vector<128x32xf32>
    %5 = arith.truncf %4 : vector<128x32xf32> to vector<128x32xbf16>
    %cst_6 = arith.constant dense<0.000000e+00> : vector<128x32xf32>
    %6 = tpu.matmul %1, %5, %cst_6 {dimension_numbers = #tpu.dot_dimension_numbers<[1], [0], [0], [1], [0, 0, 1, 1], [], []>} : vector<128x128xbf16>, vector<128x32xbf16>, vector<128x32xf32> -> vector<128x32xf32>
    %c0_7 = arith.constant 0 : index
    %c0_8 = arith.constant 0 : index
    %7 = vector.load %arg5[%c0_7, %c0_8] : memref<1x32xf32, #tpu.memory_space<vmem>>, vector<1x32xf32>
    %8 = vector.broadcast %7 : vector<1x32xf32> to vector<128x32xf32>
    %9 = arith.addf %6, %8 : vector<128x32xf32>
    %cst_9 = arith.constant 0.000000e+00 : f32
    %10 = vector.broadcast %cst_9 : f32 to vector<128x32xf32>
    %11 = arith.maximumf %9, %10 : vector<128x32xf32>
    %12 = arith.truncf %11 : vector<128x32xf32> to vector<128x32xbf16>
    %c0_10 = arith.constant 0 : index
    %c0_11 = arith.constant 0 : index
    %13 = vector.load %arg6[%c0_10, %c0_11] : memref<32x32xbf16, #tpu.memory_space<vmem>>, vector<32x32xbf16>
    %cst_12 = arith.constant dense<0.000000e+00> : vector<128x32xf32>
    %14 = tpu.matmul %12, %13, %cst_12 {dimension_numbers = #tpu.dot_dimension_numbers<[1], [0], [0], [1], [0, 0, 1, 1], [], []>} : vector<128x32xbf16>, vector<32x32xbf16>, vector<128x32xf32> -> vector<128x32xf32>
    %15 = arith.truncf %14 : vector<128x32xf32> to vector<128x32xbf16>
    %cst_13 = arith.constant dense<0.000000e+00> : vector<128x32xf32>
    %16 = tpu.matmul %1, %15, %cst_13 {dimension_numbers = #tpu.dot_dimension_numbers<[1], [0], [0], [1], [0, 0, 1, 1], [], []>} : vector<128x128xbf16>, vector<128x32xbf16>, vector<128x32xf32> -> vector<128x32xf32>
    %c0_14 = arith.constant 0 : index
    %c0_15 = arith.constant 0 : index
    %17 = vector.load %arg7[%c0_14, %c0_15] : memref<1x32xf32, #tpu.memory_space<vmem>>, vector<1x32xf32>
    %18 = vector.broadcast %17 : vector<1x32xf32> to vector<128x32xf32>
    %19 = arith.addf %16, %18 : vector<128x32xf32>
    %cst_16 = arith.constant 0.000000e+00 : f32
    %20 = vector.broadcast %cst_16 : f32 to vector<128x32xf32>
    %21 = arith.maximumf %19, %20 : vector<128x32xf32>
    %c0_17 = arith.constant 0 : index
    %c0_18 = arith.constant 0 : index
    %22 = vector.load %arg3[%c0_17, %c0_18] : memref<16x128xbf16, #tpu.memory_space<vmem>>, vector<16x128xbf16>
    %23 = arith.truncf %21 : vector<128x32xf32> to vector<128x32xbf16>
    %cst_19 = arith.constant dense<0.000000e+00> : vector<16x32xf32>
    %24 = tpu.matmul %22, %23, %cst_19 {dimension_numbers = #tpu.dot_dimension_numbers<[1], [0], [0], [1], [0, 0, 1, 1], [], []>} : vector<16x128xbf16>, vector<128x32xbf16>, vector<16x32xf32> -> vector<16x32xf32>
    %25 = arith.truncf %24 : vector<16x32xf32> to vector<16x32xbf16>
    %c0_20 = arith.constant 0 : index
    %c0_21 = arith.constant 0 : index
    %26 = vector.load %arg8[%c0_20, %c0_21] : memref<32x128xbf16, #tpu.memory_space<vmem>>, vector<32x128xbf16>
    %cst_22 = arith.constant dense<0.000000e+00> : vector<16x128xf32>
    %27 = tpu.matmul %25, %26, %cst_22 {dimension_numbers = #tpu.dot_dimension_numbers<[1], [0], [0], [1], [0, 0, 1, 1], [], []>} : vector<16x32xbf16>, vector<32x128xbf16>, vector<16x128xf32> -> vector<16x128xf32>
    %c0_23 = arith.constant 0 : index
    %c0_24 = arith.constant 0 : index
    %28 = vector.load %arg9[%c0_23, %c0_24] : memref<1x128xf32, #tpu.memory_space<vmem>>, vector<1x128xf32>
    %29 = vector.broadcast %28 : vector<1x128xf32> to vector<16x128xf32>
    %30 = arith.addf %27, %29 : vector<16x128xf32>
    %c0_25 = arith.constant 0 : index
    %c0_26 = arith.constant 0 : index
    %31 = vector.load %arg10[%c0_25, %c0_26] : memref<16x128xf32, #tpu.memory_space<vmem>>, vector<16x128xf32>
    tpu.vector_store %arg10[%c0_25, %c0_26], %30 {strides = array<i32>} : memref<16x128xf32, #tpu.memory_space<vmem>>, vector<16x128xf32>,
    return
  }
  func.func @transform_0(%arg0: i32) -> (i32, i32, i32) {
    %c0_i32 = arith.constant 0 : i32
    %c0_i32_0 = arith.constant 0 : i32
    %c0_i32_1 = arith.constant 0 : i32
    return %arg0, %c0_i32, %c0_i32_0 : i32, i32, i32
  }
  func.func @transform_1(%arg0: i32) -> (i32, i32) {
    %c0_i32 = arith.constant 0 : i32
    %c0_i32_0 = arith.constant 0 : i32
    return %arg0, %c0_i32 : i32, i32
  }
  func.func @transform_2(%arg0: i32) -> (i32, i32) {
    %c0_i32 = arith.constant 0 : i32
    %c0_i32_0 = arith.constant 0 : i32
    %c0_i32_1 = arith.constant 0 : i32
    return %c0_i32, %c0_i32_0 : i32, i32
  }
  func.func @transform_3(%arg0: i32) -> (i32, i32) {
    %c0_i32 = arith.constant 0 : i32
    %c0_i32_0 = arith.constant 0 : i32
    %c0_i32_1 = arith.constant 0 : i32
    return %c0_i32, %c0_i32_0 : i32, i32
  }
  func.func @transform_4(%arg0: i32) -> (i32, i32) {
    %c0_i32 = arith.constant 0 : i32
    %c0_i32_0 = arith.constant 0 : i32
    %c0_i32_1 = arith.constant 0 : i32
    return %c0_i32, %c0_i32_0 : i32, i32
  }
  func.func @transform_5(%arg0: i32) -> (i32, i32) {
    %c0_i32 = arith.constant 0 : i32
    %c0_i32_0 = arith.constant 0 : i32
    %c0_i32_1 = arith.constant 0 : i32
    return %c0_i32, %c0_i32_0 : i32, i32
  }
  func.func @transform_6(%arg0: i32) -> (i32, i32) {
    %c0_i32 = arith.constant 0 : i32
    %c0_i32_0 = arith.constant 0 : i32
    %c0_i32_1 = arith.constant 0 : i32
    return %c0_i32, %c0_i32_0 : i32, i32
  }
  func.func @transform_7(%arg0: i32) -> (i32, i32) {
    %c0_i32 = arith.constant 0 : i32
    %c0_i32_0 = arith.constant 0 : i32
    %c0_i32_1 = arith.constant 0 : i32
    return %c0_i32, %c0_i32_0 : i32, i32
  }
  func.func @transform_8(%arg0: i32) -> (i32, i32) {
    %c0_i32 = arith.constant 0 : i32
    %c0_i32_0 = arith.constant 0 : i32
    %c0_i32_1 = arith.constant 0 : i32
    return %c0_i32, %c0_i32_0 : i32, i32
  }
  func.func @transform_9(%arg0: i32) -> (i32, i32) {
    %c0_i32 = arith.constant 0 : i32
    %c0_i32_0 = arith.constant 0 : i32
    return %arg0, %c0_i32 : i32, i32
  }
}

</mosaic_0001>

<llo_original>
// kernel: gclassifier_forward.1
$region0: #{gclassifier_forward.1}
  #allocation0 [shape = 'u32[]', space=smem, size = 0x4, offset = 0x4, fixed_abs, tag = 'smem constant byte address 0x4 - core index']
  #allocation1 [shape = 'u32[144,128]{1,0:T(1,128)}', space=vmem, size = 0x12000, scoped, tag = 'internal scratch']
  %s0 = inlined_call_operand.vmem [shape: bf16[2,128,128], index: 0, kind: input, shape index: {}]
  %s1 = inlined_call_operand.vmem [shape: bf16[256,32], index: 1, kind: input, shape index: {}]
  %s2 = inlined_call_operand.vmem [shape: bf16[16,128], index: 2, kind: input, shape index: {}]
  %s3 = inlined_call_operand.vmem [shape: bf16[32,32], index: 3, kind: input, shape index: {}]
  %s4 = inlined_call_operand.vmem [shape: f32[1,32], index: 4, kind: input, shape index: {}]
  %s5 = inlined_call_operand.vmem [shape: bf16[32,32], index: 5, kind: input, shape index: {}]
  %s6 = inlined_call_operand.vmem [shape: f32[1,32], index: 6, kind: input, shape index: {}]
  %s7 = inlined_call_operand.vmem [shape: bf16[32,128], index: 7, kind: input, shape index: {}]
  %s8 = inlined_call_operand.vmem [shape: f32[1,128], index: 8, kind: input, shape index: {}]
  %s9 = inlined_call_operand.vmem [shape: f32[32,128], index: 9, kind: output, shape index: {}]
  %s10 = sld [smem:[#allocation0]]
  $region69: #{gclassifier_forward.1} parent=0
    _
  %s12 = ssub.s32 1, %s10
  %s13 = scalar_select 0, %s12, %s10
  loop: start=0, step=1, limit=4
  $region2: #{gclassifier_forward.1} parent=0 // loop_pre_header
    _
  $region3: #{gclassifier_forward.1} parent=0 // loop_header
    %s15 = sphi 0, %s19
    %p16 = scmp.ge.s32.totalorder %s15, 4
    %s25 = sphi 0, %s27
    %s28 = sphi 0, %s25
    %s29 = sphi 0, %s28
    %s45 = sphi 0, %s29
    %s51 = sphi 0, %s53
    %s54 = sphi 0, %s51
    %s55 = sphi 0, %s54
    %s71 = sphi 0, %s55
    %s75 = sphi 0, %s75
    %s77 = sphi 0, %s75
    %s78 = sphi 0, %s77
    %s92 = sphi 0, %s78
    %s96 = sphi 0, %s96
    %s98 = sphi 0, %s96
    %s99 = sphi 0, %s98
    %s113 = sphi 0, %s99
    %s117 = sphi 0, %s117
    %s119 = sphi 0, %s117
    %s120 = sphi 0, %s119
    %s134 = sphi 0, %s120
    %s138 = sphi 0, %s138
    %s140 = sphi 0, %s138
    %s141 = sphi 0, %s140
    %s155 = sphi 0, %s141
    %s159 = sphi 0, %s159
    %s161 = sphi 0, %s159
    %s162 = sphi 0, %s161
    %s176 = sphi 0, %s162
    %s180 = sphi 0, %s180
    %s182 = sphi 0, %s180
    %s183 = sphi 0, %s182
    %s197 = sphi 0, %s183
    %s201 = sphi 0, %s201
    %s203 = sphi 0, %s201
    %s204 = sphi 0, %s203
    %s218 = sphi 0, %s204
    %s224 = sphi 0, %s226
    %s227 = sphi 0, %s224
    %s228 = sphi 0, %s227
    %s244 = sphi 0, %s228
  $region4: #{gclassifier_forward.1} parent=0 // loop_header_branch
    %18 = sbr.rel (%p16) target = $region8
  $region5: #{gclassifier_forward.1} parent=0 // loop_body
    %s20 = ssub.s32 %s15, 1
    %s21 = ssub.s32 %s15, 2
    %s22 = sadd.s32 %s15, 1
    %s23 = ssub.s32 %s15, %s22
    %p24 = scmp.eq.s32.totalorder %s23, 0
    %s26 = sadd.s32 %s25, 1
    %s27 = scalar_select %p24, %s25, %s26
    %p30 = pneg %p24
    %p31 = scmp.eq.s32.totalorder %s15, 1
    %p32 = por %p30, %p31
    %p33 = scmp.ne.s32.totalorder %s25, %s28
    %p34 = scmp.eq.s32.totalorder %s15, 0
    %p35 = por %p33, %p34
    %p36 = scmp.ne.s32.totalorder %s25, %s28
    %p37 = scmp.eq.s32.totalorder %s20, 1
    %p38 = por %p36, %p37
    %p39 = scmp.ne.s32.totalorder %s28, %s29
    %p40 = scmp.eq.s32.totalorder %s20, 0
    %p41 = por %p39, %p40
    %p42 = scmp.ne.s32.totalorder %s28, %s29
    %p43 = scmp.eq.s32.totalorder %s21, 1
    %p44 = por %p42, %p43
    %p46 = scmp.ne.s32.totalorder %s29, %s45
    %p47 = scmp.eq.s32.totalorder %s21, 0
    %p48 = por %p46, %p47
    %s49 = ssub.s32 %s15, %s22
    %p50 = scmp.eq.s32.totalorder %s49, 0
    %s52 = sadd.s32 %s51, 1
    %s53 = scalar_select %p50, %s51, %s52
    %p56 = pneg %p50
    %p57 = scmp.eq.s32.totalorder %s15, 1
    %p58 = por %p56, %p57
    %p59 = scmp.ne.s32.totalorder %s51, %s54
    %p60 = scmp.eq.s32.totalorder %s15, 0
    %p61 = por %p59, %p60
    %p62 = scmp.ne.s32.totalorder %s51, %s54
    %p63 = scmp.eq.s32.totalorder %s20, 1
    %p64 = por %p62, %p63
    %p65 = scmp.ne.s32.totalorder %s54, %s55
    %p66 = scmp.eq.s32.totalorder %s20, 0
    %p67 = por %p65, %p66
    %p68 = scmp.ne.s32.totalorder %s54, %s55
    %p69 = scmp.eq.s32.totalorder %s21, 1
    %p70 = por %p68, %p69
    %p72 = scmp.ne.s32.totalorder %s55, %s71
    %p73 = scmp.eq.s32.totalorder %s21, 0
    %p74 = por %p72, %p73
    %s76 = sadd.s32 %s75, 1
    %p79 = scmp.eq.s32.totalorder %s15, 1
    %p80 = scmp.ne.s32.totalorder %s75, %s77
    %p81 = scmp.eq.s32.totalorder %s15, 0
    %p82 = por %p80, %p81
    %p83 = scmp.ne.s32.totalorder %s75, %s77
    %p84 = scmp.eq.s32.totalorder %s20, 1
    %p85 = por %p83, %p84
    %p86 = scmp.ne.s32.totalorder %s77, %s78
    %p87 = scmp.eq.s32.totalorder %s20, 0
    %p88 = por %p86, %p87
    %p89 = scmp.ne.s32.totalorder %s77, %s78
    %p90 = scmp.eq.s32.totalorder %s21, 1
    %p91 = por %p89, %p90
    %p93 = scmp.ne.s32.totalorder %s78, %s92
    %p94 = scmp.eq.s32.totalorder %s21, 0
    %p95 = por %p93, %p94
    %s97 = sadd.s32 %s96, 1
    %p100 = scmp.eq.s32.totalorder %s15, 1
    %p101 = scmp.ne.s32.totalorder %s96, %s98
    %p102 = scmp.eq.s32.totalorder %s15, 0
    %p103 = por %p101, %p102
    %p104 = scmp.ne.s32.totalorder %s96, %s98
    %p105 = scmp.eq.s32.totalorder %s20, 1
    %p106 = por %p104, %p105
    %p107 = scmp.ne.s32.totalorder %s98, %s99
    %p108 = scmp.eq.s32.totalorder %s20, 0
    %p109 = por %p107, %p108
    %p110 = scmp.ne.s32.totalorder %s98, %s99
    %p111 = scmp.eq.s32.totalorder %s21, 1
    %p112 = por %p110, %p111
    %p114 = scmp.ne.s32.totalorder %s99, %s113
    %p115 = scmp.eq.s32.totalorder %s21, 0
    %p116 = por %p114, %p115
    %s118 = sadd.s32 %s117, 1
    %p121 = scmp.eq.s32.totalorder %s15, 1
    %p122 = scmp.ne.s32.totalorder %s117, %s119
    %p123 = scmp.eq.s32.totalorder %s15, 0
    %p124 = por %p122, %p123
    %p125 = scmp.ne.s32.totalorder %s117, %s119
    %p126 = scmp.eq.s32.totalorder %s20, 1
    %p127 = por %p125, %p126
    %p128 = scmp.ne.s32.totalorder %s119, %s120
    %p129 = scmp.eq.s32.totalorder %s20, 0
    %p130 = por %p128, %p129
    %p131 = scmp.ne.s32.totalorder %s119, %s120
    %p132 = scmp.eq.s32.totalorder %s21, 1
    %p133 = por %p131, %p132
    %p135 = scmp.ne.s32.totalorder %s120, %s134
    %p136 = scmp.eq.s32.totalorder %s21, 0
    %p137 = por %p135, %p136
    %s139 = sadd.s32 %s138, 1
    %p142 = scmp.eq.s32.totalorder %s15, 1
    %p143 = scmp.ne.s32.totalorder %s138, %s140
    %p144 = scmp.eq.s32.totalorder %s15, 0
    %p145 = por %p143, %p144
    %p146 = scmp.ne.s32.totalorder %s138, %s140
    %p147 = scmp.eq.s32.totalorder %s20, 1
    %p148 = por %p146, %p147
    %p149 = scmp.ne.s32.totalorder %s140, %s141
    %p150 = scmp.eq.s32.totalorder %s20, 0
    %p151 = por %p149, %p150
    %p152 = scmp.ne.s32.totalorder %s140, %s141
    %p153 = scmp.eq.s32.totalorder %s21, 1
    %p154 = por %p152, %p153
    %p156 = scmp.ne.s32.totalorder %s141, %s155
    %p157 = scmp.eq.s32.totalorder %s21, 0
    %p158 = por %p156, %p157
    %s160 = sadd.s32 %s159, 1
    %p163 = scmp.eq.s32.totalorder %s15, 1
    %p164 = scmp.ne.s32.totalorder %s159, %s161
    %p165 = scmp.eq.s32.totalorder %s15, 0
    %p166 = por %p164, %p165
    %p167 = scmp.ne.s32.totalorder %s159, %s161
    %p168 = scmp.eq.s32.totalorder %s20, 1
    %p169 = por %p167, %p168
    %p170 = scmp.ne.s32.totalorder %s161, %s162
    %p171 = scmp.eq.s32.totalorder %s20, 0
    %p172 = por %p170, %p171
    %p173 = scmp.ne.s32.totalorder %s161, %s162
    %p174 = scmp.eq.s32.totalorder %s21, 1
    %p175 = por %p173, %p174
    %p177 = scmp.ne.s32.totalorder %s162, %s176
    %p178 = scmp.eq.s32.totalorder %s21, 0
    %p179 = por %p177, %p178
    %s181 = sadd.s32 %s180, 1
    %p184 = scmp.eq.s32.totalorder %s15, 1
    %p185 = scmp.ne.s32.totalorder %s180, %s182
    %p186 = scmp.eq.s32.totalorder %s15, 0
    %p187 = por %p185, %p186
    %p188 = scmp.ne.s32.totalorder %s180, %s182
    %p189 = scmp.eq.s32.totalorder %s20, 1
    %p190 = por %p188, %p189
    %p191 = scmp.ne.s32.totalorder %s182, %s183
    %p192 = scmp.eq.s32.totalorder %s20, 0
    %p193 = por %p191, %p192
    %p194 = scmp.ne.s32.totalorder %s182, %s183
    %p195 = scmp.eq.s32.totalorder %s21, 1
    %p196 = por %p194, %p195
    %p198 = scmp.ne.s32.totalorder %s183, %s197
    %p199 = scmp.eq.s32.totalorder %s21, 0
    %p200 = por %p198, %p199
    %s202 = sadd.s32 %s201, 1
    %p205 = scmp.eq.s32.totalorder %s15, 1
    %p206 = scmp.ne.s32.totalorder %s201, %s203
    %p207 = scmp.eq.s32.totalorder %s15, 0
    %p208 = por %p206, %p207
    %p209 = scmp.ne.s32.totalorder %s201, %s203
    %p210 = scmp.eq.s32.totalorder %s20, 1
    %p211 = por %p209, %p210
    %p212 = scmp.ne.s32.totalorder %s203, %s204
    %p213 = scmp.eq.s32.totalorder %s20, 0
    %p214 = por %p212, %p213
    %p215 = scmp.ne.s32.totalorder %s203, %s204
    %p216 = scmp.eq.s32.totalorder %s21, 1
    %p217 = por %p215, %p216
    %p219 = scmp.ne.s32.totalorder %s204, %s218
    %p220 = scmp.eq.s32.totalorder %s21, 0
    %p221 = por %p219, %p220
    %s222 = ssub.s32 %s15, %s22
    %p223 = scmp.eq.s32.totalorder %s222, 0
    %s225 = sadd.s32 %s224, 1
    %s226 = scalar_select %p223, %s224, %s225
    %p229 = pneg %p223
    %p230 = scmp.eq.s32.totalorder %s15, 1
    %p231 = por %p229, %p230
    %p232 = scmp.ne.s32.totalorder %s224, %s227
    %p233 = scmp.eq.s32.totalorder %s15, 0
    %p234 = por %p232, %p233
    %p235 = scmp.ne.s32.totalorder %s224, %s227
    %p236 = scmp.eq.s32.totalorder %s20, 1
    %p237 = por %p235, %p236
    %p238 = scmp.ne.s32.totalorder %s227, %s228
    %p239 = scmp.eq.s32.totalorder %s20, 0
    %p240 = por %p238, %p239
    %p241 = scmp.ne.s32.totalorder %s227, %s228
    %p242 = scmp.eq.s32.totalorder %s21, 1
    %p243 = por %p241, %p242
    %p245 = scmp.ne.s32.totalorder %s228, %s244
    %p246 = scmp.eq.s32.totalorder %s21, 0
    %p247 = por %p245, %p246
    %p248 = scmp.le.s32.totalorder 1, %s15
    %p249 = scmp.lt.s32.totalorder %s15, 3
    %p250 = pnand %p248, %p249
    %p251 = pneg %p250
    // Predicated region
    $region9: #{gclassifier_forward.1} parent=5 // pred_check
      _
    $region10: #{gclassifier_forward.1} parent=5 // pred_check_branch
      %253 = sbr.rel (%p250) target = $region12
    $region11: #{gclassifier_forward.1} parent=5 // pred_region
      %s254 = ssub.s32 %s15, 1
      // Predicated region
      $region13: #{gclassifier_forward.1} parent=11 // pred_check
        %p255 = pneg %p88
      $region14: #{gclassifier_forward.1} parent=11 // pred_check_branch
        %257 = sbr.rel (%p255) target = $region16
      $region15: #{gclassifier_forward.1} parent=11 // pred_region
        _
      $region16: #{gclassifier_forward.1} parent=11 // pred_fallthru
        _
      // Predicated region
      $region17: #{gclassifier_forward.1} parent=11 // pred_check
        %p258 = pneg %p109
      $region18: #{gclassifier_forward.1} parent=11 // pred_check_branch
        %260 = sbr.rel (%p258) target = $region20
      $region19: #{gclassifier_forward.1} parent=11 // pred_region
        _
      $region20: #{gclassifier_forward.1} parent=11 // pred_fallthru
        _
      // Predicated region
      $region21: #{gclassifier_forward.1} parent=11 // pred_check
        %p261 = pneg %p130
      $region22: #{gclassifier_forward.1} parent=11 // pred_check_branch
        %263 = sbr.rel (%p261) target = $region24
      $region23: #{gclassifier_forward.1} parent=11 // pred_region
        _
      $region24: #{gclassifier_forward.1} parent=11 // pred_fallthru
        _
      // Predicated region
      $region25: #{gclassifier_forward.1} parent=11 // pred_check
        %p264 = pneg %p151
      $region26: #{gclassifier_forward.1} parent=11 // pred_check_branch
        %266 = sbr.rel (%p264) target = $region28
      $region27: #{gclassifier_forward.1} parent=11 // pred_region
        _
      $region28: #{gclassifier_forward.1} parent=11 // pred_fallthru
        _
      // Predicated region
      $region29: #{gclassifier_forward.1} parent=11 // pred_check
        %p267 = pneg %p172
      $region30: #{gclassifier_forward.1} parent=11 // pred_check_branch
        %269 = sbr.rel (%p267) target = $region32
      $region31: #{gclassifier_forward.1} parent=11 // pred_region
        _
      $region32: #{gclassifier_forward.1} parent=11 // pred_fallthru
        _
      // Predicated region
      $region33: #{gclassifier_forward.1} parent=11 // pred_check
        %p270 = pneg %p193
      $region34: #{gclassifier_forward.1} parent=11 // pred_check_branch
        %272 = sbr.rel (%p270) target = $region36
      $region35: #{gclassifier_forward.1} parent=11 // pred_region
        _
      $region36: #{gclassifier_forward.1} parent=11 // pred_fallthru
        _
      // Predicated region
      $region37: #{gclassifier_forward.1} parent=11 // pred_check
        %p273 = pneg %p214
      $region38: #{gclassifier_forward.1} parent=11 // pred_check_branch
        %275 = sbr.rel (%p273) target = $region40
      $region39: #{gclassifier_forward.1} parent=11 // pred_region
        _
      $region40: #{gclassifier_forward.1} parent=11 // pred_fallthru
        _
    $region12: #{gclassifier_forward.1} parent=5 // pred_fallthru
      _
    %p276 = scmp.lt.s32.totalorder %s15, 2
    // Predicated region
    $region41: #{gclassifier_forward.1} parent=5 // pred_check
      %p277 = pneg %p276
    $region42: #{gclassifier_forward.1} parent=5 // pred_check_branch
      %279 = sbr.rel (%p277) target = $region44
    $region43: #{gclassifier_forward.1} parent=5 // pred_region
      // Predicated region
      $region45: #{gclassifier_forward.1} parent=43 // pred_check
        %p280 = pneg %p35
      $region46: #{gclassifier_forward.1} parent=43 // pred_check_branch
        %282 = sbr.rel (%p280) target = $region48
      $region47: #{gclassifier_forward.1} parent=43 // pred_region
        %p283 = scmp.lt.s32.totalorder %s15, 1
        %s284 = scalar_select %p283, %s15, 1
        %s285 = smul.addr %s284, 16
        %s286 = smul.addr %s285, 4
        %s287 = scalar_lea.vmem %s0, %s286
      $region48: #{gclassifier_forward.1} parent=43 // pred_fallthru
        _
      // Predicated region
      $region49: #{gclassifier_forward.1} parent=43 // pred_check
        %p288 = pneg %p61
      $region50: #{gclassifier_forward.1} parent=43 // pred_check_branch
        %290 = sbr.rel (%p288) target = $region52
      $region51: #{gclassifier_forward.1} parent=43 // pred_region
        %s291 = smul.u32 16, %s15
        %p292 = scmp.lt.s32.totalorder %s291, 31
        %s293 = scalar_select %p292, %s291, 31
        %s294 = smul.addr %s293, 4
        %s295 = scalar_lea.vmem %s1, %s294
        %s296 = smul.u32 16, %s15
      $region52: #{gclassifier_forward.1} parent=43 // pred_fallthru
        _
    $region44: #{gclassifier_forward.1} parent=5 // pred_fallthru
      _
    %p297 = scmp.le.s32.totalorder 1, %s15
    %p298 = scmp.lt.s32.totalorder %s15, 3
    %p299 = pnand %p297, %p298
    %p300 = pneg %p299
    // Predicated region
    $region53: #{gclassifier_forward.1} parent=5 // pred_check
      _
    $region54: #{gclassifier_forward.1} parent=5 // pred_check_branch
      %302 = sbr.rel (%p299) target = $region56
    $region55: #{gclassifier_forward.1} parent=5 // pred_region
      %s303 = ssub.s32 %s15, 1
      %p304 = scmp.lt.s32.totalorder %s20, 1
      %s305 = scalar_select %p304, %s20, 1
      %s306 = smul.addr %s305, 16
      %s307 = smul.addr %s306, 4
      %s308 = scalar_lea.vmem %s0, %s307
      %p309 = pneg %p41
      %p310 = pneg %p38
      %s311 = smul.u32 16, %s20
      %p312 = scmp.lt.s32.totalorder %s311, 31
      %s313 = scalar_select %p312, %s311, 31
      %s314 = smul.addr %s313, 4
      %s315 = scalar_lea.vmem %s1, %s314
      %p316 = pneg %p67
      %p317 = pneg %p64
      %p318 = pneg %p88
      %p319 = pneg %p85
      %p320 = pneg %p109
      %p321 = pneg %p106
      %p322 = pneg %p130
      %p323 = pneg %p127
      %p324 = pneg %p151
      %p325 = pneg %p148
      %p326 = pneg %p172
      %p327 = pneg %p169
      %p328 = pneg %p193
      %p329 = pneg %p190
      %p330 = pneg %p214
      %p331 = pneg %p211
      %p332 = pneg %p240
      %p333 = pneg %p237
      %s334 = smul.u32 2, %s20
      %p335 = scmp.lt.s32.totalorder %s334, 3
      %s336 = scalar_select %p335, %s334, 3
      %s337 = smul.addr %s336, 8
      %s338 = scalar_lea.vmem %s9, %s337
      %p339 = scmp.lt.s32.totalorder %s20, 1
      %s340 = scalar_select %p339, %s20, 1
      %s341 = smul.addr %s340, 16
      %s342 = smul.addr %s341, 4
      %s343 = scalar_lea.vmem %s0, %s342
      %s344 = smul.u32 16, %s20
      %p345 = scmp.lt.s32.totalorder %s344, 31
      %s346 = scalar_select %p345, %s344, 31
      %s347 = smul.addr %s346, 4
      %s348 = scalar_lea.vmem %s1, %s347
      %s349 = smul.u32 16, %s20
      %s350 = smul.u32 2, %s20
      %p351 = scmp.lt.s32.totalorder %s350, 3
      %s352 = scalar_select %p351, %s350, 3
      %s353 = smul.addr %s352, 8
      %s354 = scalar_lea.vmem %s9, %s353
      %s355 = smul.u32 2, %s20
      %v357 = vld [vmem:[%s343] sm:$0xf]
      %v358 = vld [vmem:[%s343 + $0x4] sm:$0xf]
      %v359 = vld [vmem:[%s343 + $0x8] sm:$0xf]
      %v360 = vld [vmem:[%s343 + $0xc] sm:$0xf]
      %v361 = vld [vmem:[%s343 + $0x10] sm:$0xf]
      %v362 = vld [vmem:[%s343 + $0x14] sm:$0xf]
      %v363 = vld [vmem:[%s343 + $0x18] sm:$0xf]
      %v364 = vld [vmem:[%s343 + $0x1c] sm:$0xf]
      %v365 = vld [vmem:[%s343 + $0x20] sm:$0xf]
      %v366 = vld [vmem:[%s343 + $0x24] sm:$0xf]
      %v367 = vld [vmem:[%s343 + $0x28] sm:$0xf]
      %v368 = vld [vmem:[%s343 + $0x2c] sm:$0xf]
      %v369 = vld [vmem:[%s343 + $0x30] sm:$0xf]
      %v370 = vld [vmem:[%s343 + $0x34] sm:$0xf]
      %v371 = vld [vmem:[%s343 + $0x38] sm:$0xf]
      %v372 = vld [vmem:[%s343 + $0x3c] sm:$0xf]
      %v373 = vld [vmem:[%s348] sm:$0xf]
      %v374 = vld [vmem:[%s348 + $0x4] sm:$0xf]
      %v375 = vld [vmem:[%s348 + $0x8] sm:$0xf]
      %v376 = vld [vmem:[%s348 + $0xc] sm:$0xf]
      %v377 = vld [vmem:[%s348 + $0x10] sm:$0xf]
      %v378 = vld [vmem:[%s348 + $0x14] sm:$0xf]
      %v379 = vld [vmem:[%s348 + $0x18] sm:$0xf]
      %v380 = vld [vmem:[%s348 + $0x1c] sm:$0xf]
      %v381 = vld [vmem:[%s348 + $0x20] sm:$0xf]
      %v382 = vld [vmem:[%s348 + $0x24] sm:$0xf]
      %v383 = vld [vmem:[%s348 + $0x28] sm:$0xf]
      %v384 = vld [vmem:[%s348 + $0x2c] sm:$0xf]
      %v385 = vld [vmem:[%s348 + $0x30] sm:$0xf]
      %v386 = vld [vmem:[%s348 + $0x34] sm:$0xf]
      %v387 = vld [vmem:[%s348 + $0x38] sm:$0xf]
      %v388 = vld [vmem:[%s348 + $0x3c] sm:$0xf]
      %v389 = vld [vmem:[%s3] sm:$0xf]
      %v390 = vld [vmem:[%s3 + $0x4] sm:$0xf]
      %v391 = vld [vmem:[%s3 + $0x8] sm:$0xf]
      %v392 = vld [vmem:[%s3 + $0xc] sm:$0xf]
      %v409 = vunpack.c.l.b16 %v373
      %v410 = vunpack.c.l.b16 %v374
      %v411 = vunpack.c.l.b16 %v375
      %v412 = vunpack.c.l.b16 %v376
      %v413 = vunpack.c.l.b16 %v377
      %v414 = vunpack.c.l.b16 %v378
      %v415 = vunpack.c.l.b16 %v379
      %v416 = vunpack.c.l.b16 %v380
      %v417 = vunpack.c.l.b16 %v381
      %v418 = vunpack.c.l.b16 %v382
      %v419 = vunpack.c.l.b16 %v383
      %v420 = vunpack.c.l.b16 %v384
      %v421 = vunpack.c.l.b16 %v385
      %v422 = vunpack.c.l.b16 %v386
      %v423 = vunpack.c.l.b16 %v387
      %v424 = vunpack.c.l.b16 %v388
      %v425 = vpack.c.b16 %v410, %v409
      %v426 = vpack.c.b16 %v412, %v411
      %v427 = vpack.c.b16 %v414, %v413
      %v428 = vpack.c.b16 %v416, %v415
      %v429 = vpack.c.b16 %v418, %v417
      %v430 = vpack.c.b16 %v420, %v419
      %v431 = vpack.c.b16 %v422, %v421
      %v432 = vpack.c.b16 %v424, %v423
      %v437 = vunpack.c.l.b16 %v389
      %v438 = vunpack.c.l.b16 %v390
      %v439 = vunpack.c.l.b16 %v391
      %v440 = vunpack.c.l.b16 %v392
      %v441 = vpack.c.b16 %v438, %v437
      %v442 = vpack.c.b16 %v440, %v439
      %vm445 = vcmask 261120
      %v447 = vsel %vm445, %v425, 0
      %v450 = vsel %vm445, %v426, 0
      %v453 = vsel %vm445, %v427, 0
      %v456 = vsel %vm445, %v428, 0
      %v459 = vsel %vm445, %v429, 0
      %v462 = vsel %vm445, %v430, 0
      %v465 = vsel %vm445, %v431, 0
      %v468 = vsel %vm445, %v432, 0
      %470 = vmatprep.subr.bf16.mxu0 0
      %471 = vmatpush1.bf16.msra.mxu0 %v441
      %472 = vmatprep.subr.bf16.mxu0 0
      %473 = vmatpush1.bf16.msra.mxu0 %v442
      %474 = vmatprep.subr.bf16.mxu0 0
      %475 = vmatpush1.bf16.msra.mxu0 0
      %476 = vmatprep.subr.bf16.mxu0 0
      %477 = vmatpush1.bf16.msra.mxu0 0
      %478 = vmatprep.subr.bf16.mxu0 0
      %479 = vmatpush1.bf16.msra.mxu0 0
      %480 = vmatprep.subr.bf16.mxu0 0
      %481 = vmatpush1.bf16.msra.mxu0 0
      %482 = vmatprep.subr.bf16.mxu0 0
      %483 = vmatpush1.bf16.msra.mxu0 0
      %484 = vmatprep.subr.bf16.mxu0 0
      %485 = vmatpush1.bf16.msra.mxu0 0
      %486 = vmatprep.subr.bf16.mxu0 0
      %487 = vmatpush1.bf16.msra.mxu0 0
      %488 = vmatprep.subr.bf16.mxu0 0
      %489 = vmatpush1.bf16.msra.mxu0 0
      %490 = vmatprep.subr.bf16.mxu0 0
      %491 = vmatpush1.bf16.msra.mxu0 0
      %492 = vmatprep.subr.bf16.mxu0 0
      %493 = vmatpush1.bf16.msra.mxu0 0
      %494 = vmatprep.subr.bf16.mxu0 0
      %495 = vmatpush1.bf16.msra.mxu0 0
      %496 = vmatprep.subr.bf16.mxu0 0
      %497 = vmatpush1.bf16.msra.mxu0 0
      %498 = vmatprep.subr.bf16.mxu0 0
      %499 = vmatpush1.bf16.msra.mxu0 0
      %500 = vmatprep.subr.bf16.mxu0 0
      %501 = vmatpush1.bf16.msra.mxu0 0
      %502 = vmatprep.mubr.bf16.mxu0 0
      %503 = vmatmul.mubr.bf16.gmra.mrb[0].mxu0 %v447
      %v504 = vpop.f32.mrb[0].mxu0
      %v505 = vadd.f32 0.0, %v504
      %v506 = vpop.f32.mrb[0].mxu0
      %v507 = vpop.f32.mrb[0].mxu0
      %v508 = vadd.f32 0.0, %v507
      %v509 = vpop.f32.mrb[0].mxu0
      %510 = vmatprep.mubr.bf16.mxu0 0
      %511 = vmatmul.mubr.bf16.gmra.mrb[0].mxu0 %v450
      %v512 = vpop.f32.mrb[0].mxu0
      %v513 = vadd.f32 0.0, %v512
      %v514 = vpop.f32.mrb[0].mxu0
      %v515 = vpop.f32.mrb[0].mxu0
      %v516 = vadd.f32 0.0, %v515
      %v517 = vpop.f32.mrb[0].mxu0
      %518 = vmatprep.mubr.bf16.mxu0 0
      %519 = vmatmul.mubr.bf16.gmra.mrb[0].mxu0 %v453
      %v520 = vpop.f32.mrb[0].mxu0
      %v521 = vadd.f32 0.0, %v520
      %v522 = vpop.f32.mrb[0].mxu0
      %v523 = vpop.f32.mrb[0].mxu0
      %v524 = vadd.f32 0.0, %v523
      %v525 = vpop.f32.mrb[0].mxu0
      %526 = vmatprep.mubr.bf16.mxu0 0
      %527 = vmatmul.mubr.bf16.gmra.mrb[0].mxu0 %v456
      %v528 = vpop.f32.mrb[0].mxu0
      %v529 = vadd.f32 0.0, %v528
      %v530 = vpop.f32.mrb[0].mxu0
      %v531 = vpop.f32.mrb[0].mxu0
      %v532 = vadd.f32 0.0, %v531
      %v533 = vpop.f32.mrb[0].mxu0
      %534 = vmatprep.mubr.bf16.mxu0 0
      %535 = vmatmul.mubr.bf16.gmra.mrb[0].mxu0 %v459
      %v536 = vpop.f32.mrb[0].mxu0
      %v537 = vadd.f32 0.0, %v536
      %v538 = vpop.f32.mrb[0].mxu0
      %v539 = vpop.f32.mrb[0].mxu0
      %v540 = vadd.f32 0.0, %v539
      %v541 = vpop.f32.mrb[0].mxu0
      %542 = vmatprep.mubr.bf16.mxu0 0
      %543 = vmatmul.mubr.bf16.gmra.mrb[0].mxu0 %v462
      %v544 = vpop.f32.mrb[0].mxu0
      %v545 = vadd.f32 0.0, %v544
      %v546 = vpop.f32.mrb[0].mxu0
      %v547 = vpop.f32.mrb[0].mxu0
      %v548 = vadd.f32 0.0, %v547
      %v549 = vpop.f32.mrb[0].mxu0
      %550 = vmatprep.mubr.bf16.mxu0 0
      %551 = vmatmul.mubr.bf16.gmra.mrb[0].mxu0 %v465
      %v552 = vpop.f32.mrb[0].mxu0
      %v553 = vadd.f32 0.0, %v552
      %v554 = vpop.f32.mrb[0].mxu0
      %v555 = vpop.f32.mrb[0].mxu0
      %v556 = vadd.f32 0.0, %v555
      %v557 = vpop.f32.mrb[0].mxu0
      %558 = vmatprep.mubr.bf16.mxu0 0
      %559 = vmatmul.mubr.bf16.gmra.mrb[0].mxu0 %v468
      %v560 = vpop.f32.mrb[0].mxu0
      %v561 = vadd.f32 0.0, %v560
      %v562 = vpop.f32.mrb[0].mxu0
      %v563 = vpop.f32.mrb[0].mxu0
      %v564 = vadd.f32 0.0, %v563
      %v565 = vpop.f32.mrb[0].mxu0
      %566 = vdwg.mxu0
      %v567 = vpack.c.bf16 %v508, %v505
      %v568 = vpack.c.bf16 %v516, %v513
      %v569 = vpack.c.bf16 %v524, %v521
      %v570 = vpack.c.bf16 %v532, %v529
      %v571 = vpack.c.bf16 %v540, %v537
      %v572 = vpack.c.bf16 %v548, %v545
      %v573 = vpack.c.bf16 %v556, %v553
      %v574 = vpack.c.bf16 %v564, %v561
      %v575 = vld [vmem:[%s4] sm:$0x1]
      %v577 = vlaneseq
      %v578 = vshrl.u32 %v577, 7
      %v579 = vsub.s32 0, %v578
      %v580 = vrot.slane %v575, %v579
      %v598 = vunpack.c.l.b16 %v357
      %v599 = vunpack.c.l.b16 %v358
      %v600 = vunpack.c.l.b16 %v359
      %v601 = vunpack.c.l.b16 %v360
      %v602 = vunpack.c.l.b16 %v361
      %v603 = vunpack.c.l.b16 %v362
      %v604 = vunpack.c.l.b16 %v363
      %v605 = vunpack.c.l.b16 %v364
      %v606 = vunpack.c.l.b16 %v365
      %v607 = vunpack.c.l.b16 %v366
      %v608 = vunpack.c.l.b16 %v367
      %v609 = vunpack.c.l.b16 %v368
      %v610 = vunpack.c.l.b16 %v369
      %v611 = vunpack.c.l.b16 %v370
      %v612 = vunpack.c.l.b16 %v371
      %v613 = vunpack.c.l.b16 %v372
      %v614 = vpack.c.b16 %v599, %v598
      %v615 = vpack.c.b16 %v601, %v600
      %v616 = vpack.c.b16 %v603, %v602
      %v617 = vpack.c.b16 %v605, %v604
      %v618 = vpack.c.b16 %v607, %v606
      %v619 = vpack.c.b16 %v609, %v608
      %v620 = vpack.c.b16 %v611, %v610
      %v621 = vpack.c.b16 %v613, %v612
      %630 = vmatprep.subr.bf16.mxu0 0
      %631 = vmatpush1.bf16.msra.mxu0 %v567
      %632 = vmatprep.subr.bf16.mxu0 0
      %633 = vmatpush1.bf16.msra.mxu0 %v568
      %634 = vmatprep.subr.bf16.mxu0 0
      %635 = vmatpush1.bf16.msra.mxu0 %v569
      %636 = vmatprep.subr.bf16.mxu0 0
      %637 = vmatpush1.bf16.msra.mxu0 %v570
      %638 = vmatprep.subr.bf16.mxu0 0
      %639 = vmatpush1.bf16.msra.mxu0 %v571
      %640 = vmatprep.subr.bf16.mxu0 0
      %641 = vmatpush1.bf16.msra.mxu0 %v572
      %642 = vmatprep.subr.bf16.mxu0 0
      %643 = vmatpush1.bf16.msra.mxu0 %v573
      %644 = vmatprep.subr.bf16.mxu0 0
      %645 = vmatpush1.bf16.msra.mxu0 %v574
      %646 = vmatprep.subr.bf16.mxu0 0
      %647 = vmatpush1.bf16.msra.mxu0 0
      %648 = vmatprep.subr.bf16.mxu0 0
      %649 = vmatpush1.bf16.msra.mxu0 0
      %650 = vmatprep.subr.bf16.mxu0 0
      %651 = vmatpush1.bf16.msra.mxu0 0
      %652 = vmatprep.subr.bf16.mxu0 0
      %653 = vmatpush1.bf16.msra.mxu0 0
      %654 = vmatprep.subr.bf16.mxu0 0
      %655 = vmatpush1.bf16.msra.mxu0 0
      %656 = vmatprep.subr.bf16.mxu0 0
      %657 = vmatpush1.bf16.msra.mxu0 0
      %658 = vmatprep.subr.bf16.mxu0 0
      %659 = vmatpush1.bf16.msra.mxu0 0
      %660 = vmatprep.subr.bf16.mxu0 0
      %661 = vmatpush1.bf16.msra.mxu0 0
      %662 = vmatprep.mubr.bf16.mxu0 0
      %663 = vmatmul.mubr.bf16.gmra.mrb[0].mxu0 %v614
      %v664 = vpop.f32.mrb[0].mxu0
      %v665 = vadd.f32 %v580, %v664
      %v666 = vpop.f32.mrb[0].mxu0
      %v667 = vpop.f32.mrb[0].mxu0
      %v668 = vadd.f32 %v580, %v667
      %v669 = vpop.f32.mrb[0].mxu0
      %670 = vmatprep.mubr.bf16.mxu0 0
      %671 = vmatmul.mubr.bf16.gmra.mrb[0].mxu0 %v615
      %v672 = vpop.f32.mrb[0].mxu0
      %v673 = vadd.f32 %v580, %v672
      %v674 = vpop.f32.mrb[0].mxu0
      %v675 = vpop.f32.mrb[0].mxu0
      %v676 = vadd.f32 %v580, %v675
      %v677 = vpop.f32.mrb[0].mxu0
      %678 = vmatprep.mubr.bf16.mxu0 0
      %679 = vmatmul.mubr.bf16.gmra.mrb[0].mxu0 %v616
      %v680 = vpop.f32.mrb[0].mxu0
      %v681 = vadd.f32 %v580, %v680
      %v682 = vpop.f32.mrb[0].mxu0
      %v683 = vpop.f32.mrb[0].mxu0
      %v684 = vadd.f32 %v580, %v683
      %v685 = vpop.f32.mrb[0].mxu0
      %686 = vmatprep.mubr.bf16.mxu0 0
      %687 = vmatmul.mubr.bf16.gmra.mrb[0].mxu0 %v617
      %v688 = vpop.f32.mrb[0].mxu0
      %v689 = vadd.f32 %v580, %v688
      %v690 = vpop.f32.mrb[0].mxu0
      %v691 = vpop.f32.mrb[0].mxu0
      %v692 = vadd.f32 %v580, %v691
      %v693 = vpop.f32.mrb[0].mxu0
      %694 = vmatprep.mubr.bf16.mxu0 0
      %695 = vmatmul.mubr.bf16.gmra.mrb[0].mxu0 %v618
      %v696 = vpop.f32.mrb[0].mxu0
      %v697 = vadd.f32 %v580, %v696
      %v698 = vpop.f32.mrb[0].mxu0
      %v699 = vpop.f32.mrb[0].mxu0
      %v700 = vadd.f32 %v580, %v699
      %v701 = vpop.f32.mrb[0].mxu0
      %702 = vmatprep.mubr.bf16.mxu0 0
      %703 = vmatmul.mubr.bf16.gmra.mrb[0].mxu0 %v619
      %v704 = vpop.f32.mrb[0].mxu0
      %v705 = vadd.f32 %v580, %v704
      %v706 = vpop.f32.mrb[0].mxu0
      %v707 = vpop.f32.mrb[0].mxu0
      %v708 = vadd.f32 %v580, %v707
      %v709 = vpop.f32.mrb[0].mxu0
      %710 = vmatprep.mubr.bf16.mxu0 0
      %711 = vmatmul.mubr.bf16.gmra.mrb[0].mxu0 %v620
      %v712 = vpop.f32.mrb[0].mxu0
      %v713 = vadd.f32 %v580, %v712
      %v714 = vpop.f32.mrb[0].mxu0
      %v715 = vpop.f32.mrb[0].mxu0
      %v716 = vadd.f32 %v580, %v715
      %v717 = vpop.f32.mrb[0].mxu0
      %718 = vmatprep.mubr.bf16.mxu0 0
      %719 = vmatmul.mubr.bf16.gmra.mrb[0].mxu0 %v621
      %v720 = vpop.f32.mrb[0].mxu0
      %v721 = vadd.f32 %v580, %v720
      %v722 = vpop.f32.mrb[0].mxu0
      %v723 = vpop.f32.mrb[0].mxu0
      %v724 = vadd.f32 %v580, %v723
      %v725 = vpop.f32.mrb[0].mxu0
      %726 = vdwg.mxu0
      %v727 = vmax.f32 %v665, 0.0
      %v728 = vmax.f32 %v668, 0.0
      %v729 = vmax.f32 %v673, 0.0
      %v730 = vmax.f32 %v676, 0.0
      %v731 = vmax.f32 %v681, 0.0
      %v732 = vmax.f32 %v684, 0.0
      %v733 = vmax.f32 %v689, 0.0
      %v734 = vmax.f32 %v692, 0.0
      %v735 = vmax.f32 %v697, 0.0
      %v736 = vmax.f32 %v700, 0.0
      %v737 = vmax.f32 %v705, 0.0
      %v738 = vmax.f32 %v708, 0.0
      %v739 = vmax.f32 %v713, 0.0
      %v740 = vmax.f32 %v716, 0.0
      %v741 = vmax.f32 %v721, 0.0
      %v742 = vmax.f32 %v724, 0.0
      %v743 = vpack.c.bf16 %v728, %v727
      %v744 = vpack.c.bf16 %v730, %v729
      %v745 = vpack.c.bf16 %v732, %v731
      %v746 = vpack.c.bf16 %v734, %v733
      %v747 = vpack.c.bf16 %v736, %v735
      %v748 = vpack.c.bf16 %v738, %v737
      %v749 = vpack.c.bf16 %v740, %v739
      %v750 = vpack.c.bf16 %v742, %v741
      %v751 = vld [vmem:[%s5] sm:$0xf]
      %v752 = vld [vmem:[%s5 + $0x4] sm:$0xf]
      %v753 = vld [vmem:[%s5 + $0x8] sm:$0xf]
      %v754 = vld [vmem:[%s5 + $0xc] sm:$0xf]
      %v759 = vunpack.c.l.b16 %v751
      %v760 = vunpack.c.l.b16 %v752
      %v761 = vunpack.c.l.b16 %v753
      %v762 = vunpack.c.l.b16 %v754
      %v763 = vpack.c.b16 %v760, %v759
      %v764 = vpack.c.b16 %v762, %v761
      %v768 = vsel %vm445, %v743, 0
      %v771 = vsel %vm445, %v744, 0
      %v774 = vsel %vm445, %v745, 0
      %v777 = vsel %vm445, %v746, 0
      %v780 = vsel %vm445, %v747, 0
      %v783 = vsel %vm445, %v748, 0
      %v786 = vsel %vm445, %v749, 0
      %v789 = vsel %vm445, %v750, 0
      %791 = vmatprep.subr.bf16.mxu0 0
      %792 = vmatpush1.bf16.msra.mxu0 %v763
      %793 = vmatprep.subr.bf16.mxu0 0
      %794 = vmatpush1.bf16.msra.mxu0 %v764
      %795 = vmatprep.subr.bf16.mxu0 0
      %796 = vmatpush1.bf16.msra.mxu0 0
      %797 = vmatprep.subr.bf16.mxu0 0
      %798 = vmatpush1.bf16.msra.mxu0 0
      %799 = vmatprep.subr.bf16.mxu0 0
      %800 = vmatpush1.bf16.msra.mxu0 0
      %801 = vmatprep.subr.bf16.mxu0 0
      %802 = vmatpush1.bf16.msra.mxu0 0
      %803 = vmatprep.subr.bf16.mxu0 0
      %804 = vmatpush1.bf16.msra.mxu0 0
      %805 = vmatprep.subr.bf16.mxu0 0
      %806 = vmatpush1.bf16.msra.mxu0 0
      %807 = vmatprep.subr.bf16.mxu0 0
      %808 = vmatpush1.bf16.msra.mxu0 0
      %809 = vmatprep.subr.bf16.mxu0 0
      %810 = vmatpush1.bf16.msra.mxu0 0
      %811 = vmatprep.subr.bf16.mxu0 0
      %812 = vmatpush1.bf16.msra.mxu0 0
      %813 = vmatprep.subr.bf16.mxu0 0
      %814 = vmatpush1.bf16.msra.mxu0 0
      %815 = vmatprep.subr.bf16.mxu0 0
      %816 = vmatpush1.bf16.msra.mxu0 0
      %817 = vmatprep.subr.bf16.mxu0 0
      %818 = vmatpush1.bf16.msra.mxu0 0
      %819 = vmatprep.subr.bf16.mxu0 0
      %820 = vmatpush1.bf16.msra.mxu0 0
      %821 = vmatprep.subr.bf16.mxu0 0
      %822 = vmatpush1.bf16.msra.mxu0 0
      %823 = vmatprep.mubr.bf16.mxu0 0
      %824 = vmatmul.mubr.bf16.gmra.mrb[0].mxu0 %v768
      %v825 = vpop.f32.mrb[0].mxu0
      %v826 = vadd.f32 0.0, %v825
      %v827 = vpop.f32.mrb[0].mxu0
      %v828 = vpop.f32.mrb[0].mxu0
      %v829 = vadd.f32 0.0, %v828
      %v830 = vpop.f32.mrb[0].mxu0
      %831 = vmatprep.mubr.bf16.mxu0 0
      %832 = vmatmul.mubr.bf16.gmra.mrb[0].mxu0 %v771
      %v833 = vpop.f32.mrb[0].mxu0
      %v834 = vadd.f32 0.0, %v833
      %v835 = vpop.f32.mrb[0].mxu0
      %v836 = vpop.f32.mrb[0].mxu0
      %v837 = vadd.f32 0.0, %v836
      %v838 = vpop.f32.mrb[0].mxu0
      %839 = vmatprep.mubr.bf16.mxu0 0
      %840 = vmatmul.mubr.bf16.gmra.mrb[0].mxu0 %v774
      %v841 = vpop.f32.mrb[0].mxu0
      %v842 = vadd.f32 0.0, %v841
      %v843 = vpop.f32.mrb[0].mxu0
      %v844 = vpop.f32.mrb[0].mxu0
      %v845 = vadd.f32 0.0, %v844
      %v846 = vpop.f32.mrb[0].mxu0
      %847 = vmatprep.mubr.bf16.mxu0 0
      %848 = vmatmul.mubr.bf16.gmra.mrb[0].mxu0 %v777
      %v849 = vpop.f32.mrb[0].mxu0
      %v850 = vadd.f32 0.0, %v849
      %v851 = vpop.f32.mrb[0].mxu0
      %v852 = vpop.f32.mrb[0].mxu0
      %v853 = vadd.f32 0.0, %v852
      %v854 = vpop.f32.mrb[0].mxu0
      %855 = vmatprep.mubr.bf16.mxu0 0
      %856 = vmatmul.mubr.bf16.gmra.mrb[0].mxu0 %v780
      %v857 = vpop.f32.mrb[0].mxu0
      %v858 = vadd.f32 0.0, %v857
      %v859 = vpop.f32.mrb[0].mxu0
      %v860 = vpop.f32.mrb[0].mxu0
      %v861 = vadd.f32 0.0, %v860
      %v862 = vpop.f32.mrb[0].mxu0
      %863 = vmatprep.mubr.bf16.mxu0 0
      %864 = vmatmul.mubr.bf16.gmra.mrb[0].mxu0 %v783
      %v865 = vpop.f32.mrb[0].mxu0
      %v866 = vadd.f32 0.0, %v865
      %v867 = vpop.f32.mrb[0].mxu0
      %v868 = vpop.f32.mrb[0].mxu0
      %v869 = vadd.f32 0.0, %v868
      %v870 = vpop.f32.mrb[0].mxu0
      %871 = vmatprep.mubr.bf16.mxu0 0
      %872 = vmatmul.mubr.bf16.gmra.mrb[0].mxu0 %v786
      %v873 = vpop.f32.mrb[0].mxu0
      %v874 = vadd.f32 0.0, %v873
      %v875 = vpop.f32.mrb[0].mxu0
      %v876 = vpop.f32.mrb[0].mxu0
      %v877 = vadd.f32 0.0, %v876
      %v878 = vpop.f32.mrb[0].mxu0
      %879 = vmatprep.mubr.bf16.mxu0 0
      %880 = vmatmul.mubr.bf16.gmra.mrb[0].mxu0 %v789
      %v881 = vpop.f32.mrb[0].mxu0
      %v882 = vadd.f32 0.0, %v881
      %v883 = vpop.f32.mrb[0].mxu0
      %v884 = vpop.f32.mrb[0].mxu0
      %v885 = vadd.f32 0.0, %v884
      %v886 = vpop.f32.mrb[0].mxu0
      %887 = vdwg.mxu0
      %v888 = vpack.c.bf16 %v829, %v826
      %v889 = vpack.c.bf16 %v837, %v834
      %v890 = vpack.c.bf16 %v845, %v842
      %v891 = vpack.c.bf16 %v853, %v850
      %v892 = vpack.c.bf16 %v861, %v858
      %v893 = vpack.c.bf16 %v869, %v866
      %v894 = vpack.c.bf16 %v877, %v874
      %v895 = vpack.c.bf16 %v885, %v882
      %v896 = vld [vmem:[%s6] sm:$0x1]
      %v898 = vlaneseq
      %v899 = vshrl.u32 %v898, 7
      %v900 = vsub.s32 0, %v899
      %v901 = vrot.slane %v896, %v900
      %903 = vmatprep.subr.bf16.mxu0 0
      %904 = vmatpush1.bf16.msra.mxu0 %v888
      %905 = vmatprep.subr.bf16.mxu0 0
      %906 = vmatpush1.bf16.msra.mxu0 %v889
      %907 = vmatprep.subr.bf16.mxu0 0
      %908 = vmatpush1.bf16.msra.mxu0 %v890
      %909 = vmatprep.subr.bf16.mxu0 0
      %910 = vmatpush1.bf16.msra.mxu0 %v891
      %911 = vmatprep.subr.bf16.mxu0 0
      %912 = vmatpush1.bf16.msra.mxu0 %v892
      %913 = vmatprep.subr.bf16.mxu0 0
      %914 = vmatpush1.bf16.msra.mxu0 %v893
      %915 = vmatprep.subr.bf16.mxu0 0
      %916 = vmatpush1.bf16.msra.mxu0 %v894
      %917 = vmatprep.subr.bf16.mxu0 0
      %918 = vmatpush1.bf16.msra.mxu0 %v895
      %919 = vmatprep.subr.bf16.mxu0 0
      %920 = vmatpush1.bf16.msra.mxu0 0
      %921 = vmatprep.subr.bf16.mxu0 0
      %922 = vmatpush1.bf16.msra.mxu0 0
      %923 = vmatprep.subr.bf16.mxu0 0
      %924 = vmatpush1.bf16.msra.mxu0 0
      %925 = vmatprep.subr.bf16.mxu0 0
      %926 = vmatpush1.bf16.msra.mxu0 0
      %927 = vmatprep.subr.bf16.mxu0 0
      %928 = vmatpush1.bf16.msra.mxu0 0
      %929 = vmatprep.subr.bf16.mxu0 0
      %930 = vmatpush1.bf16.msra.mxu0 0
      %931 = vmatprep.subr.bf16.mxu0 0
      %932 = vmatpush1.bf16.msra.mxu0 0
      %933 = vmatprep.subr.bf16.mxu0 0
      %934 = vmatpush1.bf16.msra.mxu0 0
      %935 = vmatprep.mubr.bf16.mxu0 0
      %936 = vmatmul.mubr.bf16.gmra.mrb[0].mxu0 %v614
      %v937 = vpop.f32.mrb[0].mxu0
      %v938 = vadd.f32 %v901, %v937
      %v939 = vpop.f32.mrb[0].mxu0
      %v940 = vpop.f32.mrb[0].mxu0
      %v941 = vadd.f32 %v901, %v940
      %v942 = vpop.f32.mrb[0].mxu0
      %943 = vmatprep.mubr.bf16.mxu0 0
      %944 = vmatmul.mubr.bf16.gmra.mrb[0].mxu0 %v615
      %v945 = vpop.f32.mrb[0].mxu0
      %v946 = vadd.f32 %v901, %v945
      %v947 = vpop.f32.mrb[0].mxu0
      %v948 = vpop.f32.mrb[0].mxu0
      %v949 = vadd.f32 %v901, %v948
      %v950 = vpop.f32.mrb[0].mxu0
      %951 = vmatprep.mubr.bf16.mxu0 0
      %952 = vmatmul.mubr.bf16.gmra.mrb[0].mxu0 %v616
      %v953 = vpop.f32.mrb[0].mxu0
      %v954 = vadd.f32 %v901, %v953
      %v955 = vpop.f32.mrb[0].mxu0
      %v956 = vpop.f32.mrb[0].mxu0
      %v957 = vadd.f32 %v901, %v956
      %v958 = vpop.f32.mrb[0].mxu0
      %959 = vmatprep.mubr.bf16.mxu0 0
      %960 = vmatmul.mubr.bf16.gmra.mrb[0].mxu0 %v617
      %v961 = vpop.f32.mrb[0].mxu0
      %v962 = vadd.f32 %v901, %v961
      %v963 = vpop.f32.mrb[0].mxu0
      %v964 = vpop.f32.mrb[0].mxu0
      %v965 = vadd.f32 %v901, %v964
      %v966 = vpop.f32.mrb[0].mxu0
      %967 = vmatprep.mubr.bf16.mxu0 0
      %968 = vmatmul.mubr.bf16.gmra.mrb[0].mxu0 %v618
      %v969 = vpop.f32.mrb[0].mxu0
      %v970 = vadd.f32 %v901, %v969
      %v971 = vpop.f32.mrb[0].mxu0
      %v972 = vpop.f32.mrb[0].mxu0
      %v973 = vadd.f32 %v901, %v972
      %v974 = vpop.f32.mrb[0].mxu0
      %975 = vmatprep.mubr.bf16.mxu0 0
      %976 = vmatmul.mubr.bf16.gmra.mrb[0].mxu0 %v619
      %v977 = vpop.f32.mrb[0].mxu0
      %v978 = vadd.f32 %v901, %v977
      %v979 = vpop.f32.mrb[0].mxu0
      %v980 = vpop.f32.mrb[0].mxu0
      %v981 = vadd.f32 %v901, %v980
      %v982 = vpop.f32.mrb[0].mxu0
      %983 = vmatprep.mubr.bf16.mxu0 0
      %984 = vmatmul.mubr.bf16.gmra.mrb[0].mxu0 %v620
      %v985 = vpop.f32.mrb[0].mxu0
      %v986 = vadd.f32 %v901, %v985
      %v987 = vpop.f32.mrb[0].mxu0
      %v988 = vpop.f32.mrb[0].mxu0
      %v989 = vadd.f32 %v901, %v988
      %v990 = vpop.f32.mrb[0].mxu0
      %991 = vmatprep.mubr.bf16.mxu0 0
      %992 = vmatmul.mubr.bf16.gmra.mrb[0].mxu0 %v621
      %v993 = vpop.f32.mrb[0].mxu0
      %v994 = vadd.f32 %v901, %v993
      %v995 = vpop.f32.mrb[0].mxu0
      %v996 = vpop.f32.mrb[0].mxu0
      %v997 = vadd.f32 %v901, %v996
      %v998 = vpop.f32.mrb[0].mxu0
      %999 = vdwg.mxu0
      %v1000 = vmax.f32 %v938, 0.0
      %v1001 = vmax.f32 %v941, 0.0
      %v1002 = vmax.f32 %v946, 0.0
      %v1003 = vmax.f32 %v949, 0.0
      %v1004 = vmax.f32 %v954, 0.0
      %v1005 = vmax.f32 %v957, 0.0
      %v1006 = vmax.f32 %v962, 0.0
      %v1007 = vmax.f32 %v965, 0.0
      %v1008 = vmax.f32 %v970, 0.0
      %v1009 = vmax.f32 %v973, 0.0
      %v1010 = vmax.f32 %v978, 0.0
      %v1011 = vmax.f32 %v981, 0.0
      %v1012 = vmax.f32 %v986, 0.0
      %v1013 = vmax.f32 %v989, 0.0
      %v1014 = vmax.f32 %v994, 0.0
      %v1015 = vmax.f32 %v997, 0.0
      %v1016 = vld [vmem:[%s2] sm:$0xf]
      %v1017 = vld [vmem:[%s2 + $0x4] sm:$0xf]
      %v1018 = vpack.c.bf16 %v1001, %v1000
      %v1019 = vpack.c.bf16 %v1003, %v1002
      %v1020 = vpack.c.bf16 %v1005, %v1004
      %v1021 = vpack.c.bf16 %v1007, %v1006
      %v1022 = vpack.c.bf16 %v1009, %v1008
      %v1023 = vpack.c.bf16 %v1011, %v1010
      %v1024 = vpack.c.bf16 %v1013, %v1012
      %v1025 = vpack.c.bf16 %v1015, %v1014
      %v1028 = vunpack.c.l.b16 %v1016
      %v1029 = vunpack.c.l.b16 %v1017
      %v1030 = vpack.c.b16 %v1029, %v1028
      %1032 = vmatprep.subr.bf16.mxu0 0
      %1033 = vmatpush1.bf16.msra.mxu0 %v1018
      %1034 = vmatprep.subr.bf16.mxu0 0
      %1035 = vmatpush1.bf16.msra.mxu0 %v1019
      %1036 = vmatprep.subr.bf16.mxu0 0
      %1037 = vmatpush1.bf16.msra.mxu0 %v1020
      %1038 = vmatprep.subr.bf16.mxu0 0
      %1039 = vmatpush1.bf16.msra.mxu0 %v1021
      %1040 = vmatprep.subr.bf16.mxu0 0
      %1041 = vmatpush1.bf16.msra.mxu0 %v1022
      %1042 = vmatprep.subr.bf16.mxu0 0
      %1043 = vmatpush1.bf16.msra.mxu0 %v1023
      %1044 = vmatprep.subr.bf16.mxu0 0
      %1045 = vmatpush1.bf16.msra.mxu0 %v1024
      %1046 = vmatprep.subr.bf16.mxu0 0
      %1047 = vmatpush1.bf16.msra.mxu0 %v1025
      %1048 = vmatprep.subr.bf16.mxu0 0
      %1049 = vmatpush1.bf16.msra.mxu0 0
      %1050 = vmatprep.subr.bf16.mxu0 0
      %1051 = vmatpush1.bf16.msra.mxu0 0
      %1052 = vmatprep.subr.bf16.mxu0 0
      %1053 = vmatpush1.bf16.msra.mxu0 0
      %1054 = vmatprep.subr.bf16.mxu0 0
      %1055 = vmatpush1.bf16.msra.mxu0 0
      %1056 = vmatprep.subr.bf16.mxu0 0
      %1057 = vmatpush1.bf16.msra.mxu0 0
      %1058 = vmatprep.subr.bf16.mxu0 0
      %1059 = vmatpush1.bf16.msra.mxu0 0
      %1060 = vmatprep.subr.bf16.mxu0 0
      %1061 = vmatpush1.bf16.msra.mxu0 0
      %1062 = vmatprep.subr.bf16.mxu0 0
      %1063 = vmatpush1.bf16.msra.mxu0 0
      %1064 = vmatprep.mubr.bf16.mxu0 0
      %1065 = vmatmul.mubr.bf16.gmra.mrb[0].mxu0 %v1030
      %v1066 = vpop.f32.mrb[0].mxu0
      %v1067 = vadd.f32 0.0, %v1066
      %v1068 = vpop.f32.mrb[0].mxu0
      %v1069 = vpop.f32.mrb[0].mxu0
      %v1070 = vadd.f32 0.0, %v1069
      %v1071 = vpop.f32.mrb[0].mxu0
      %1072 = vdwg.mxu0
      %v1073 = vpack.c.bf16 %v1070, %v1067
      %v1074 = vld [vmem:[%s7] sm:$0xf]
      %v1075 = vld [vmem:[%s7 + $0x4] sm:$0xf]
      %v1076 = vld [vmem:[%s7 + $0x8] sm:$0xf]
      %v1077 = vld [vmem:[%s7 + $0xc] sm:$0xf]
      %v1078 = vld [vmem:[%s8] sm:$0x1]
      %v1080 = vlaneseq
      %v1081 = vshrl.u32 %v1080, 7
      %v1082 = vsub.s32 0, %v1081
      %v1083 = vrot.slane %v1078, %v1082
      %v1089 = vunpack.c.l.b16 %v1074
      %v1090 = vunpack.c.l.b16 %v1075
      %v1091 = vunpack.c.l.b16 %v1076
      %v1092 = vunpack.c.l.b16 %v1077
      %v1093 = vpack.c.b16 %v1090, %v1089
      %v1094 = vpack.c.b16 %v1092, %v1091
      %v1098 = vsel %vm445, %v1073, 0
      %1100 = vmatprep.subr.bf16.mxu0 0
      %1101 = vmatpush1.bf16.msra.mxu0 %v1093
      %1102 = vmatprep.subr.bf16.mxu0 0
      %1103 = vmatpush1.bf16.msra.mxu0 %v1094
      %1104 = vmatprep.subr.bf16.mxu0 0
      %1105 = vmatpush1.bf16.msra.mxu0 0
      %1106 = vmatprep.subr.bf16.mxu0 0
      %1107 = vmatpush1.bf16.msra.mxu0 0
      %1108 = vmatprep.subr.bf16.mxu0 0
      %1109 = vmatpush1.bf16.msra.mxu0 0
      %1110 = vmatprep.subr.bf16.mxu0 0
      %1111 = vmatpush1.bf16.msra.mxu0 0
      %1112 = vmatprep.subr.bf16.mxu0 0
      %1113 = vmatpush1.bf16.msra.mxu0 0
      %1114 = vmatprep.subr.bf16.mxu0 0
      %1115 = vmatpush1.bf16.msra.mxu0 0
      %1116 = vmatprep.subr.bf16.mxu0 0
      %1117 = vmatpush1.bf16.msra.mxu0 0
      %1118 = vmatprep.subr.bf16.mxu0 0
      %1119 = vmatpush1.bf16.msra.mxu0 0
      %1120 = vmatprep.subr.bf16.mxu0 0
      %1121 = vmatpush1.bf16.msra.mxu0 0
      %1122 = vmatprep.subr.bf16.mxu0 0
      %1123 = vmatpush1.bf16.msra.mxu0 0
      %1124 = vmatprep.subr.bf16.mxu0 0
      %1125 = vmatpush1.bf16.msra.mxu0 0
      %1126 = vmatprep.subr.bf16.mxu0 0
      %1127 = vmatpush1.bf16.msra.mxu0 0
      %1128 = vmatprep.subr.bf16.mxu0 0
      %1129 = vmatpush1.bf16.msra.mxu0 0
      %1130 = vmatprep.subr.bf16.mxu0 0
      %1131 = vmatpush1.bf16.msra.mxu0 0
      %1132 = vmatprep.mubr.bf16.mxu0 0
      %1133 = vmatmul.mubr.bf16.gmra.mrb[0].mxu0 %v1098
      %v1134 = vpop.f32.mrb[0].mxu0
      %v1135 = vadd.f32 %v1083, %v1134
      %v1136 = vpop.f32.mrb[0].mxu0
      %v1137 = vpop.f32.mrb[0].mxu0
      %v1138 = vadd.f32 %v1083, %v1137
      %v1139 = vpop.f32.mrb[0].mxu0
      %1140 = vdwg.mxu0
      %1141 = vst [vmem:[%s354] sm:$0xff] %v1135
      %1142 = vst [vmem:[%s354 + $0x8] sm:$0xff] %v1138
      %s1143 = smul.u32 2, %s20
      %p1144 = scmp.lt.s32.totalorder %s1143, 3
      %s1145 = scalar_select %p1144, %s1143, 3
      %s1146 = smul.addr %s1145, 8
      %s1147 = scalar_lea.vmem %s9, %s1146
      // Predicated region
      $region57: #{gclassifier_forward.1} parent=55 // pred_check
        %p1148 = pneg %p237
      $region58: #{gclassifier_forward.1} parent=55 // pred_check_branch
        %1150 = sbr.rel (%p1148) target = $region60
      $region59: #{gclassifier_forward.1} parent=55 // pred_region
        %s1151 = smul.u32 2, %s20
      $region60: #{gclassifier_forward.1} parent=55 // pred_fallthru
        _
    $region56: #{gclassifier_forward.1} parent=5 // pred_fallthru
      _
    %p1152 = scmp.le.s32.totalorder 2, %s15
    // Predicated region
    $region61: #{gclassifier_forward.1} parent=5 // pred_check
      %p1153 = pneg %p1152
    $region62: #{gclassifier_forward.1} parent=5 // pred_check_branch
      %1155 = sbr.rel (%p1153) target = $region64
    $region63: #{gclassifier_forward.1} parent=5 // pred_region
      %s1156 = ssub.s32 %s15, 2
      // Predicated region
      $region65: #{gclassifier_forward.1} parent=63 // pred_check
        %p1157 = pneg %p243
      $region66: #{gclassifier_forward.1} parent=63 // pred_check_branch
        %1159 = sbr.rel (%p1157) target = $region68
      $region67: #{gclassifier_forward.1} parent=63 // pred_region
        %s1160 = smul.u32 2, %s21
        %p1161 = scmp.lt.s32.totalorder %s1160, 3
        %s1162 = scalar_select %p1161, %s1160, 3
        %s1163 = smul.addr %s1162, 8
        %s1164 = scalar_lea.vmem %s9, %s1163
      $region68: #{gclassifier_forward.1} parent=63 // pred_fallthru
        _
    $region64: #{gclassifier_forward.1} parent=5 // pred_fallthru
      _
  $region6: #{gclassifier_forward.1} parent=0 // loop_footer
    %s19 = sadd.s32 1, %s15
  $region7: #{gclassifier_forward.1} parent=0 // loop_footer_branch
    %14 = sbr.rel target = $region3
  $region8: #{gclassifier_forward.1} parent=0 // loop_exit
    _

</llo_original>
